<compile_context>
chip_gen: v7x
topology: tpu7x:2x2x1
jax: 0.10.0
libtpu: 0.0.40
codegen_flags: <defaults>
</compile_context>

<pallas_src>
import math
import functools

import jax
import jax.numpy as jnp
from jax import lax
from jax.experimental import pallas as pl
from jax.experimental.pallas import tpu as pltpu


def _round_up(x, m):
    return ((x + m - 1) // m) * m


def _cross_attn_kernel(num_heads, head_dim, S,
                       x1_ref, x2_ref, wq_ref, wkv_ref, wo_ref, b_ref,
                       out_ref, attnw_ref, o_scratch):
    E = num_heads * head_dim
    x1 = x1_ref[...]                       # (TL, E) query tile, native dtype
    x2 = x2_ref[...]                       # (S, E)

    b = b_ref[...]                         # (1, 3E + E_pad) packed biases
    bq = b[:, :E]
    bkv = b[:, E:3 * E]
    bo = b[:, 3 * E:]                      # (1, E_pad), already lane-padded

    # Projections. 1/sqrt(head_dim) is pre-folded into wq/bq wrapper-side.
    q = jnp.dot(x1, wq_ref[...], preferred_element_type=jnp.float32) + bq
    # Fused K|V projection: one (S,E)@(E,2E) matmul instead of two (S,E)@(E,E).
    kv = jnp.dot(x2, wkv_ref[...], preferred_element_type=jnp.float32) + bkv

    TL = x1.shape[0]
    w_sum = jnp.zeros((TL, S), jnp.float32)

    # TODO(synk): at realistic sizes move heads (or KV tiles) onto a grid axis /
    # lax.fori_loop with pl.ds + pl.multiple_of so live ranges stay bounded, and
    # keep head_dim a multiple of 128 so per-head slices are lane-aligned.
    for h in range(num_heads):
        lo = h * head_dim
        hi = lo + head_dim
        qh = q[:, lo:hi]                   # (TL, hd), already scaled
        kh = kv[:, lo:hi]                  # (S, hd)
        vh = kv[:, E + lo:E + hi]          # (S, hd)

        # Scores: contract the head dim directly (no kh.T materialization).
        s = lax.dot_general(qh, kh, (((1,), (1,)), ((), ())),
                            preferred_element_type=jnp.float32)   # (TL, S)
        s = s - jnp.max(s, axis=-1, keepdims=True)
        p = jnp.exp(s)
        d = jnp.sum(p, axis=-1, keepdims=True)
        # EUP approx reciprocal + one Newton step -> ~f32 accuracy, off the VALU.
        r = pl.reciprocal(d, approx=True)
        r = r * (2.0 - d * r)
        p = p * r                                                  # softmax

        w_sum = w_sum + p
        oh = jnp.dot(p, vh, preferred_element_type=jnp.float32)   # (TL, hd)
        # Stash per-head context at a static lane offset (vst slot is idle here);
        # the single full-K output projection happens after the loop.
        o_scratch[:, lo:hi] = oh

    # One (TL,E)@(E,E_pad) matmul instead of H K=head_dim matmuls; wo/bo are
    # lane-padded wrapper-side so this store is lane-dense.
    out = jnp.dot(o_scratch[...], wo_ref[...],
                  preferred_element_type=jnp.float32) + bo
    out_ref[...] = out.astype(out_ref.dtype)

    # Mean over heads (PyTorch default average_attn_weights=True), stored into a
    # 128-lane-padded slab.
    w_avg = (w_sum * (1.0 / num_heads)).astype(attnw_ref.dtype)
    S_pad = attnw_ref.shape[-1]
    if S_pad == S:
        attnw_ref[...] = w_avg
    else:
        attnw_ref[...] = jnp.zeros_like(attnw_ref)
        attnw_ref[:, :S] = w_avg


def cross_attention(input1, input2, params, num_heads):
    """input1: (L, E), input2: (S, E). Returns (output (L, E), attn_weights (L, S))."""
    L, E = input1.shape
    S, E2 = input2.shape
    assert E == E2 and E % num_heads == 0
    head_dim = E // num_heads
    E_pad = _round_up(E, 128)
    S_pad = _round_up(S, 128)

    TL = L if L <= 128 else 128            # query tile; grid axis is "parallel"
    nL = pl.cdiv(L, TL)

    kernel = functools.partial(_cross_attn_kernel, num_heads, head_dim, S)

    itemsize = input1.dtype.itemsize
    cost = pl.CostEstimate(
        flops=2 * L * E * E + 4 * S * E * E + 4 * L * S * E + 2 * L * E * E_pad,
        transcendentals=num_heads * L * S + num_heads * L,
        bytes_accessed=itemsize * (L * E + S * E + 3 * E * E + E * E_pad
                                   + 3 * E + E_pad + L * E_pad)
                       + 4 * L * S_pad)

    out_p, attnw_p = pl.pallas_call(
        kernel,
        out_shape=(jax.ShapeDtypeStruct((L, E_pad), input1.dtype),
                   jax.ShapeDtypeStruct((L, S_pad), jnp.float32)),
        grid=(nL,),
        in_specs=[
            pl.BlockSpec((TL, E), lambda i: (i, 0)),             # x1 query tile
            pl.BlockSpec((S, E), lambda i: (0, 0)),              # x2 (resident)
            pl.BlockSpec((E, E), lambda i: (0, 0)),              # wq (pre-scaled)
            pl.BlockSpec((E, 2 * E), lambda i: (0, 0)),          # wkv fused
            pl.BlockSpec((E, E_pad), lambda i: (0, 0)),          # wo lane-padded
            pl.BlockSpec((1, 3 * E + E_pad), lambda i: (0, 0)),  # packed biases
        ],
        out_specs=(
            pl.BlockSpec((TL, E_pad), lambda i: (i, 0)),
            pl.BlockSpec((TL, S_pad), lambda i: (i, 0)),
        ),
        scratch_shapes=[pltpu.VMEM((TL, E), jnp.float32)],
        compiler_params=pltpu.CompilerParams(
            dimension_semantics=("parallel",)),
        cost_estimate=cost,
    )(input1, input2, params["wq"], params["wkv"], params["wo"], params["b"])

    # Slice the lane-padded slabs back to the logical widths (wrapper-side).
    return out_p[:, :E], attnw_p[:, :S]


def pack_params(in_proj_weight, in_proj_bias, out_proj_weight, out_proj_bias,
                num_heads):
    """PyTorch MultiheadAttention params -> kernel params (y = x @ W + b form).
    K|V fused into one (E,2E) weight, 1/sqrt(head_dim) folded into Q, wo/bo
    lane-padded to a multiple of 128, all biases packed into one operand."""
    E = out_proj_weight.shape[0]
    head_dim = E // num_heads
    scale = 1.0 / math.sqrt(head_dim)
    E_pad = _round_up(E, 128)

    wq = in_proj_weight[:E].T * scale                              # (E, E)
    wkv = jnp.concatenate([in_proj_weight[E:2 * E].T,
                           in_proj_weight[2 * E:].T], axis=1)      # (E, 2E)
    wo_pad = jnp.zeros((E, E_pad), out_proj_weight.dtype
                       ).at[:, :E].set(out_proj_weight.T)          # (E, E_pad)

    bq = in_proj_bias[:E] * scale
    bkv = in_proj_bias[E:]
    bo_pad = jnp.zeros((E_pad,), out_proj_bias.dtype).at[:E].set(out_proj_bias)
    b = jnp.concatenate([bq, bkv, bo_pad]).reshape(1, 3 * E + E_pad)

    # TODO(synk): add an optional bf16 cast of wq/wkv/wo (and x1/x2) for v6e/v7x
    # MXU throughput; keep softmax math in f32 (would break the 1e-5 check).
    return {"wq": wq, "wkv": wkv, "wo": wo_pad, "b": b}


def _reference(x1, x2, in_w, in_b, out_w, out_b, num_heads):
    """Pure-JAX replica of torch.nn.MultiheadAttention forward (eval, no mask)."""
    L, E = x1.shape
    S = x2.shape[0]
    hd = E // num_heads
    q = x1 @ in_w[:E].T + in_b[:E]
    k = x2 @ in_w[E:2 * E].T + in_b[E:2 * E]
    v = x2 @ in_w[2 * E:].T + in_b[2 * E:]
    q = q.reshape(L, num_heads, hd).transpose(1, 0, 2) / jnp.sqrt(hd)
    k = k.reshape(S, num_heads, hd).transpose(1, 0, 2)
    v = v.reshape(S, num_heads, hd).transpose(1, 0, 2)
    s = jnp.einsum("hld,hsd->hls", q, k)
    p = jax.nn.softmax(s, axis=-1)
    o = jnp.einsum("hls,hsd->hld", p, v).transpose(1, 0, 2).reshape(L, E)
    return o @ out_w.T + out_b, p.mean(axis=0)


if __name__ == "__main__":
    # small shapes implied by the forward: input1 (L, E), input2 (S, E)
    L, S, E, H = 8, 8, 32, 4

    key = jax.random.PRNGKey(0)
    k1, k2, k3, k4, k5, k6 = jax.random.split(key, 6)

    input1 = jax.random.normal(k1, (L, E), jnp.float32)
    input2 = jax.random.normal(k2, (S, E), jnp.float32)

    # deterministic MultiheadAttention parameters (PyTorch layout: y = x @ W.T + b)
    in_proj_weight = 0.1 * jax.random.normal(k3, (3 * E, E), jnp.float32)
    in_proj_bias = 0.1 * jax.random.normal(k4, (3 * E,), jnp.float32)
    out_proj_weight = 0.1 * jax.random.normal(k5, (E, E), jnp.float32)
    out_proj_bias = 0.1 * jax.random.normal(k6, (E,), jnp.float32)

    params = pack_params(in_proj_weight, in_proj_bias,
                         out_proj_weight, out_proj_bias, H)

    out, attnw = cross_attention(input1, input2, params, H)
    out = jax.block_until_ready(out)
    attnw = jax.block_until_ready(attnw)

    ref_out, ref_attnw = _reference(input1, input2, in_proj_weight, in_proj_bias,
                                    out_proj_weight, out_proj_bias, H)
    assert out.shape == (L, E) and attnw.shape == (L, S)
    assert jnp.allclose(out, ref_out, rtol=1e-5, atol=1e-5)
    assert jnp.allclose(attnw, ref_attnw, rtol=1e-5, atol=1e-5)

    print("KERNEL_OK")
</pallas_src>

<mosaic_0001>
module attributes {stable_mosaic.version = 11 : i64} {
  func.func @_cross_attn_kernel(%arg0: i32, %arg1: memref<8x32xf32, #tpu.memory_space<vmem>>, %arg2: memref<8x32xf32, #tpu.memory_space<vmem>>, %arg3: memref<32x32xf32, #tpu.memory_space<vmem>>, %arg4: memref<32x64xf32, #tpu.memory_space<vmem>>, %arg5: memref<32x128xf32, #tpu.memory_space<vmem>>, %arg6: memref<1x224xf32, #tpu.memory_space<vmem>>, %arg7: memref<8x128xf32, #tpu.memory_space<vmem>>, %arg8: memref<8x128xf32, #tpu.memory_space<vmem>>, %arg9: memref<8x32xf32, #tpu.memory_space<vmem>>) attributes {dimension_semantics = [#tpu.dimension_semantics<parallel>], iteration_bounds = array<i64: 1>, scalar_prefetch = 0 : i64, scratch_operands = 1 : i64, tpu.core_type = #tpu.core_type<tc>, window_params = [{transform_indices = @transform_0, window_bounds = array<i64: 8, 32>}, {pipeline_mode = #tpu.pipeline_mode<synchronous>, transform_indices = @transform_1, window_bounds = array<i64: 8, 32>}, {pipeline_mode = #tpu.pipeline_mode<synchronous>, transform_indices = @transform_2, window_bounds = array<i64: 32, 32>}, {pipeline_mode = #tpu.pipeline_mode<synchronous>, transform_indices = @transform_3, window_bounds = array<i64: 32, 64>}, {pipeline_mode = #tpu.pipeline_mode<synchronous>, transform_indices = @transform_4, window_bounds = array<i64: 32, 128>}, {pipeline_mode = #tpu.pipeline_mode<synchronous>, transform_indices = @transform_5, window_bounds = array<i64: 1, 224>}, {transform_indices = @transform_6, window_bounds = array<i64: 8, 128>}, {transform_indices = @transform_7, window_bounds = array<i64: 8, 128>}]} {
    %c0 = arith.constant 0 : index
    %c0_0 = arith.constant 0 : index
    %0 = vector.load %arg1[%c0, %c0_0] : memref<8x32xf32, #tpu.memory_space<vmem>>, vector<8x32xf32>
    %c0_1 = arith.constant 0 : index
    %c0_2 = arith.constant 0 : index
    %1 = vector.load %arg2[%c0_1, %c0_2] : memref<8x32xf32, #tpu.memory_space<vmem>>, vector<8x32xf32>
    %c0_3 = arith.constant 0 : index
    %c0_4 = arith.constant 0 : index
    %2 = vector.load %arg6[%c0_3, %c0_4] : memref<1x224xf32, #tpu.memory_space<vmem>>, vector<1x224xf32>
    %3 = vector.extract_strided_slice %2 {offsets = [0, 0], sizes = [1, 32], strides = [1, 1]} : vector<1x224xf32> to vector<1x32xf32>
    %4 = vector.extract_strided_slice %2 {offsets = [0, 32], sizes = [1, 64], strides = [1, 1]} : vector<1x224xf32> to vector<1x64xf32>
    %5 = vector.extract_strided_slice %2 {offsets = [0, 96], sizes = [1, 128], strides = [1, 1]} : vector<1x224xf32> to vector<1x128xf32>
    %c0_5 = arith.constant 0 : index
    %c0_6 = arith.constant 0 : index
    %6 = vector.load %arg3[%c0_5, %c0_6] : memref<32x32xf32, #tpu.memory_space<vmem>>, vector<32x32xf32>
    %cst = arith.constant dense<0.000000e+00> : vector<8x32xf32>
    %7 = tpu.matmul %0, %6, %cst {dimension_numbers = #tpu.dot_dimension_numbers<[1], [0], [0], [1], [0, 0, 1, 1], [], []>} : vector<8x32xf32>, vector<32x32xf32>, vector<8x32xf32> -> vector<8x32xf32>
    %8 = vector.broadcast %3 : vector<1x32xf32> to vector<8x32xf32>
    %9 = arith.addf %7, %8 : vector<8x32xf32>
    %c0_7 = arith.constant 0 : index
    %c0_8 = arith.constant 0 : index
    %10 = vector.load %arg4[%c0_7, %c0_8] : memref<32x64xf32, #tpu.memory_space<vmem>>, vector<32x64xf32>
    %cst_9 = arith.constant dense<0.000000e+00> : vector<8x64xf32>
    %11 = tpu.matmul %1, %10, %cst_9 {dimension_numbers = #tpu.dot_dimension_numbers<[1], [0], [0], [1], [0, 0, 1, 1], [], []>} : vector<8x32xf32>, vector<32x64xf32>, vector<8x64xf32> -> vector<8x64xf32>
    %12 = vector.broadcast %4 : vector<1x64xf32> to vector<8x64xf32>
    %13 = arith.addf %11, %12 : vector<8x64xf32>
    %cst_10 = arith.constant 0.000000e+00 : f32
    %14 = vector.broadcast %cst_10 : f32 to vector<8x8xf32>
    %15 = vector.extract_strided_slice %9 {offsets = [0, 0], sizes = [8, 8], strides = [1, 1]} : vector<8x32xf32> to vector<8x8xf32>
    %16 = vector.extract_strided_slice %13 {offsets = [0, 0], sizes = [8, 8], strides = [1, 1]} : vector<8x64xf32> to vector<8x8xf32>
    %17 = vector.extract_strided_slice %13 {offsets = [0, 32], sizes = [8, 8], strides = [1, 1]} : vector<8x64xf32> to vector<8x8xf32>
    %cst_11 = arith.constant dense<0.000000e+00> : vector<8x8xf32>
    %18 = tpu.matmul %15, %16, %cst_11 {dimension_numbers = #tpu.dot_dimension_numbers<[1], [1], [0], [0], [0, 0, 1, 0], [], []>} : vector<8x8xf32>, vector<8x8xf32>, vector<8x8xf32> -> vector<8x8xf32>
    %cst_12 = arith.constant dense<0xFF800000> : vector<8xf32>
    %19 = vector.multi_reduction <maximumf>, %18, %cst_12 [1] : vector<8x8xf32> to vector<8xf32>
    %20 = vector.shape_cast %19 : vector<8xf32> to vector<8x1xf32>
    %21 = vector.broadcast %20 : vector<8x1xf32> to vector<8x8xf32>
    %22 = arith.subf %18, %21 : vector<8x8xf32>
    %23 = math.exp %22 : vector<8x8xf32>
    %cst_13 = arith.constant dense<0.000000e+00> : vector<8xf32>
    %24 = vector.multi_reduction <add>, %23, %cst_13 [1] : vector<8x8xf32> to vector<8xf32>
    %25 = vector.shape_cast %24 : vector<8xf32> to vector<8x1xf32>
    %26 = tpu.reciprocal %25 {approx = true} : vector<8x1xf32> -> vector<8x1xf32>
    %27 = arith.mulf %25, %26 : vector<8x1xf32>
    %cst_14 = arith.constant 2.000000e+00 : f32
    %28 = vector.broadcast %cst_14 : f32 to vector<8x1xf32>
    %29 = arith.subf %28, %27 : vector<8x1xf32>
    %30 = arith.mulf %26, %29 : vector<8x1xf32>
    %31 = vector.broadcast %30 : vector<8x1xf32> to vector<8x8xf32>
    %32 = arith.mulf %23, %31 : vector<8x8xf32>
    %33 = arith.addf %14, %32 : vector<8x8xf32>
    %cst_15 = arith.constant dense<0.000000e+00> : vector<8x8xf32>
    %34 = tpu.matmul %32, %17, %cst_15 {dimension_numbers = #tpu.dot_dimension_numbers<[1], [0], [0], [1], [0, 0, 1, 1], [], []>} : vector<8x8xf32>, vector<8x8xf32>, vector<8x8xf32> -> vector<8x8xf32>
    %c0_16 = arith.constant 0 : index
    %c0_17 = arith.constant 0 : index
    %35 = vector.load %arg9[%c0_16, %c0_17] : memref<8x32xf32, #tpu.memory_space<vmem>>, vector<8x8xf32>
    tpu.vector_store %arg9[%c0_16, %c0_17], %34 {strides = array<i32>} : memref<8x32xf32, #tpu.memory_space<vmem>>, vector<8x8xf32>,
    %36 = vector.extract_strided_slice %9 {offsets = [0, 8], sizes = [8, 8], strides = [1, 1]} : vector<8x32xf32> to vector<8x8xf32>
    %37 = vector.extract_strided_slice %13 {offsets = [0, 8], sizes = [8, 8], strides = [1, 1]} : vector<8x64xf32> to vector<8x8xf32>
    %38 = vector.extract_strided_slice %13 {offsets = [0, 40], sizes = [8, 8], strides = [1, 1]} : vector<8x64xf32> to vector<8x8xf32>
    %cst_18 = arith.constant dense<0.000000e+00> : vector<8x8xf32>
    %39 = tpu.matmul %36, %37, %cst_18 {dimension_numbers = #tpu.dot_dimension_numbers<[1], [1], [0], [0], [0, 0, 1, 0], [], []>} : vector<8x8xf32>, vector<8x8xf32>, vector<8x8xf32> -> vector<8x8xf32>
    %cst_19 = arith.constant dense<0xFF800000> : vector<8xf32>
    %40 = vector.multi_reduction <maximumf>, %39, %cst_19 [1] : vector<8x8xf32> to vector<8xf32>
    %41 = vector.shape_cast %40 : vector<8xf32> to vector<8x1xf32>
    %42 = vector.broadcast %41 : vector<8x1xf32> to vector<8x8xf32>
    %43 = arith.subf %39, %42 : vector<8x8xf32>
    %44 = math.exp %43 : vector<8x8xf32>
    %cst_20 = arith.constant dense<0.000000e+00> : vector<8xf32>
    %45 = vector.multi_reduction <add>, %44, %cst_20 [1] : vector<8x8xf32> to vector<8xf32>
    %46 = vector.shape_cast %45 : vector<8xf32> to vector<8x1xf32>
    %47 = tpu.reciprocal %46 {approx = true} : vector<8x1xf32> -> vector<8x1xf32>
    %48 = arith.mulf %46, %47 : vector<8x1xf32>
    %cst_21 = arith.constant 2.000000e+00 : f32
    %49 = vector.broadcast %cst_21 : f32 to vector<8x1xf32>
    %50 = arith.subf %49, %48 : vector<8x1xf32>
    %51 = arith.mulf %47, %50 : vector<8x1xf32>
    %52 = vector.broadcast %51 : vector<8x1xf32> to vector<8x8xf32>
    %53 = arith.mulf %44, %52 : vector<8x8xf32>
    %54 = arith.addf %33, %53 : vector<8x8xf32>
    %cst_22 = arith.constant dense<0.000000e+00> : vector<8x8xf32>
    %55 = tpu.matmul %53, %38, %cst_22 {dimension_numbers = #tpu.dot_dimension_numbers<[1], [0], [0], [1], [0, 0, 1, 1], [], []>} : vector<8x8xf32>, vector<8x8xf32>, vector<8x8xf32> -> vector<8x8xf32>
    %c0_23 = arith.constant 0 : index
    %c8 = arith.constant 8 : index
    %56 = vector.load %arg9[%c0_23, %c8] : memref<8x32xf32, #tpu.memory_space<vmem>>, vector<8x8xf32>
    tpu.vector_store %arg9[%c0_23, %c8], %55 {strides = array<i32>} : memref<8x32xf32, #tpu.memory_space<vmem>>, vector<8x8xf32>,
    %57 = vector.extract_strided_slice %9 {offsets = [0, 16], sizes = [8, 8], strides = [1, 1]} : vector<8x32xf32> to vector<8x8xf32>
    %58 = vector.extract_strided_slice %13 {offsets = [0, 16], sizes = [8, 8], strides = [1, 1]} : vector<8x64xf32> to vector<8x8xf32>
    %59 = vector.extract_strided_slice %13 {offsets = [0, 48], sizes = [8, 8], strides = [1, 1]} : vector<8x64xf32> to vector<8x8xf32>
    %cst_24 = arith.constant dense<0.000000e+00> : vector<8x8xf32>
    %60 = tpu.matmul %57, %58, %cst_24 {dimension_numbers = #tpu.dot_dimension_numbers<[1], [1], [0], [0], [0, 0, 1, 0], [], []>} : vector<8x8xf32>, vector<8x8xf32>, vector<8x8xf32> -> vector<8x8xf32>
    %cst_25 = arith.constant dense<0xFF800000> : vector<8xf32>
    %61 = vector.multi_reduction <maximumf>, %60, %cst_25 [1] : vector<8x8xf32> to vector<8xf32>
    %62 = vector.shape_cast %61 : vector<8xf32> to vector<8x1xf32>
    %63 = vector.broadcast %62 : vector<8x1xf32> to vector<8x8xf32>
    %64 = arith.subf %60, %63 : vector<8x8xf32>
    %65 = math.exp %64 : vector<8x8xf32>
    %cst_26 = arith.constant dense<0.000000e+00> : vector<8xf32>
    %66 = vector.multi_reduction <add>, %65, %cst_26 [1] : vector<8x8xf32> to vector<8xf32>
    %67 = vector.shape_cast %66 : vector<8xf32> to vector<8x1xf32>
    %68 = tpu.reciprocal %67 {approx = true} : vector<8x1xf32> -> vector<8x1xf32>
    %69 = arith.mulf %67, %68 : vector<8x1xf32>
    %cst_27 = arith.constant 2.000000e+00 : f32
    %70 = vector.broadcast %cst_27 : f32 to vector<8x1xf32>
    %71 = arith.subf %70, %69 : vector<8x1xf32>
    %72 = arith.mulf %68, %71 : vector<8x1xf32>
    %73 = vector.broadcast %72 : vector<8x1xf32> to vector<8x8xf32>
    %74 = arith.mulf %65, %73 : vector<8x8xf32>
    %75 = arith.addf %54, %74 : vector<8x8xf32>
    %cst_28 = arith.constant dense<0.000000e+00> : vector<8x8xf32>
    %76 = tpu.matmul %74, %59, %cst_28 {dimension_numbers = #tpu.dot_dimension_numbers<[1], [0], [0], [1], [0, 0, 1, 1], [], []>} : vector<8x8xf32>, vector<8x8xf32>, vector<8x8xf32> -> vector<8x8xf32>
    %c0_29 = arith.constant 0 : index
    %c16 = arith.constant 16 : index
    %77 = vector.load %arg9[%c0_29, %c16] : memref<8x32xf32, #tpu.memory_space<vmem>>, vector<8x8xf32>
    tpu.vector_store %arg9[%c0_29, %c16], %76 {strides = array<i32>} : memref<8x32xf32, #tpu.memory_space<vmem>>, vector<8x8xf32>,
    %78 = vector.extract_strided_slice %9 {offsets = [0, 24], sizes = [8, 8], strides = [1, 1]} : vector<8x32xf32> to vector<8x8xf32>
    %79 = vector.extract_strided_slice %13 {offsets = [0, 24], sizes = [8, 8], strides = [1, 1]} : vector<8x64xf32> to vector<8x8xf32>
    %80 = vector.extract_strided_slice %13 {offsets = [0, 56], sizes = [8, 8], strides = [1, 1]} : vector<8x64xf32> to vector<8x8xf32>
    %cst_30 = arith.constant dense<0.000000e+00> : vector<8x8xf32>
    %81 = tpu.matmul %78, %79, %cst_30 {dimension_numbers = #tpu.dot_dimension_numbers<[1], [1], [0], [0], [0, 0, 1, 0], [], []>} : vector<8x8xf32>, vector<8x8xf32>, vector<8x8xf32> -> vector<8x8xf32>
    %cst_31 = arith.constant dense<0xFF800000> : vector<8xf32>
    %82 = vector.multi_reduction <maximumf>, %81, %cst_31 [1] : vector<8x8xf32> to vector<8xf32>
    %83 = vector.shape_cast %82 : vector<8xf32> to vector<8x1xf32>
    %84 = vector.broadcast %83 : vector<8x1xf32> to vector<8x8xf32>
    %85 = arith.subf %81, %84 : vector<8x8xf32>
    %86 = math.exp %85 : vector<8x8xf32>
    %cst_32 = arith.constant dense<0.000000e+00> : vector<8xf32>
    %87 = vector.multi_reduction <add>, %86, %cst_32 [1] : vector<8x8xf32> to vector<8xf32>
    %88 = vector.shape_cast %87 : vector<8xf32> to vector<8x1xf32>
    %89 = tpu.reciprocal %88 {approx = true} : vector<8x1xf32> -> vector<8x1xf32>
    %90 = arith.mulf %88, %89 : vector<8x1xf32>
    %cst_33 = arith.constant 2.000000e+00 : f32
    %91 = vector.broadcast %cst_33 : f32 to vector<8x1xf32>
    %92 = arith.subf %91, %90 : vector<8x1xf32>
    %93 = arith.mulf %89, %92 : vector<8x1xf32>
    %94 = vector.broadcast %93 : vector<8x1xf32> to vector<8x8xf32>
    %95 = arith.mulf %86, %94 : vector<8x8xf32>
    %96 = arith.addf %75, %95 : vector<8x8xf32>
    %cst_34 = arith.constant dense<0.000000e+00> : vector<8x8xf32>
    %97 = tpu.matmul %95, %80, %cst_34 {dimension_numbers = #tpu.dot_dimension_numbers<[1], [0], [0], [1], [0, 0, 1, 1], [], []>} : vector<8x8xf32>, vector<8x8xf32>, vector<8x8xf32> -> vector<8x8xf32>
    %c0_35 = arith.constant 0 : index
    %c24 = arith.constant 24 : index
    %98 = vector.load %arg9[%c0_35, %c24] : memref<8x32xf32, #tpu.memory_space<vmem>>, vector<8x8xf32>
    tpu.vector_store %arg9[%c0_35, %c24], %97 {strides = array<i32>} : memref<8x32xf32, #tpu.memory_space<vmem>>, vector<8x8xf32>,
    %c0_36 = arith.constant 0 : index
    %c0_37 = arith.constant 0 : index
    %99 = vector.load %arg9[%c0_36, %c0_37] : memref<8x32xf32, #tpu.memory_space<vmem>>, vector<8x32xf32>
    %c0_38 = arith.constant 0 : index
    %c0_39 = arith.constant 0 : index
    %100 = vector.load %arg5[%c0_38, %c0_39] : memref<32x128xf32, #tpu.memory_space<vmem>>, vector<32x128xf32>
    %cst_40 = arith.constant dense<0.000000e+00> : vector<8x128xf32>
    %101 = tpu.matmul %99, %100, %cst_40 {dimension_numbers = #tpu.dot_dimension_numbers<[1], [0], [0], [1], [0, 0, 1, 1], [], []>} : vector<8x32xf32>, vector<32x128xf32>, vector<8x128xf32> -> vector<8x128xf32>
    %102 = vector.broadcast %5 : vector<1x128xf32> to vector<8x128xf32>
    %103 = arith.addf %101, %102 : vector<8x128xf32>
    %c0_41 = arith.constant 0 : index
    %c0_42 = arith.constant 0 : index
    %104 = vector.load %arg7[%c0_41, %c0_42] : memref<8x128xf32, #tpu.memory_space<vmem>>, vector<8x128xf32>
    tpu.vector_store %arg7[%c0_41, %c0_42], %103 {strides = array<i32>} : memref<8x128xf32, #tpu.memory_space<vmem>>, vector<8x128xf32>,
    %cst_43 = arith.constant 2.500000e-01 : f32
    %105 = vector.broadcast %cst_43 : f32 to vector<8x8xf32>
    %106 = arith.mulf %96, %105 : vector<8x8xf32>
    %cst_44 = arith.constant 0.000000e+00 : f32
    %107 = vector.broadcast %cst_44 : f32 to vector<8x128xf32>
    %c0_45 = arith.constant 0 : index
    %c0_46 = arith.constant 0 : index
    %108 = vector.load %arg8[%c0_45, %c0_46] : memref<8x128xf32, #tpu.memory_space<vmem>>, vector<8x128xf32>
    tpu.vector_store %arg8[%c0_45, %c0_46], %107 {strides = array<i32>} : memref<8x128xf32, #tpu.memory_space<vmem>>, vector<8x128xf32>,
    %c0_47 = arith.constant 0 : index
    %c0_48 = arith.constant 0 : index
    %109 = vector.load %arg8[%c0_47, %c0_48] : memref<8x128xf32, #tpu.memory_space<vmem>>, vector<8x8xf32>
    tpu.vector_store %arg8[%c0_47, %c0_48], %106 {strides = array<i32>} : memref<8x128xf32, #tpu.memory_space<vmem>>, vector<8x8xf32>,
    return
  }
  func.func @transform_0(%arg0: i32) -> (i32, i32) {
    %c0_i32 = arith.constant 0 : i32
    %c0_i32_0 = arith.constant 0 : i32
    return %arg0, %c0_i32 : i32, i32
  }
  func.func @transform_1(%arg0: i32) -> (i32, i32) {
    %c0_i32 = arith.constant 0 : i32
    %c0_i32_0 = arith.constant 0 : i32
    %c0_i32_1 = arith.constant 0 : i32
    return %c0_i32, %c0_i32_0 : i32, i32
  }
  func.func @transform_2(%arg0: i32) -> (i32, i32) {
    %c0_i32 = arith.constant 0 : i32
    %c0_i32_0 = arith.constant 0 : i32
    %c0_i32_1 = arith.constant 0 : i32
    return %c0_i32, %c0_i32_0 : i32, i32
  }
  func.func @transform_3(%arg0: i32) -> (i32, i32) {
    %c0_i32 = arith.constant 0 : i32
    %c0_i32_0 = arith.constant 0 : i32
    %c0_i32_1 = arith.constant 0 : i32
    return %c0_i32, %c0_i32_0 : i32, i32
  }
  func.func @transform_4(%arg0: i32) -> (i32, i32) {
    %c0_i32 = arith.constant 0 : i32
    %c0_i32_0 = arith.constant 0 : i32
    %c0_i32_1 = arith.constant 0 : i32
    return %c0_i32, %c0_i32_0 : i32, i32
  }
  func.func @transform_5(%arg0: i32) -> (i32, i32) {
    %c0_i32 = arith.constant 0 : i32
    %c0_i32_0 = arith.constant 0 : i32
    %c0_i32_1 = arith.constant 0 : i32
    return %c0_i32, %c0_i32_0 : i32, i32
  }
  func.func @transform_6(%arg0: i32) -> (i32, i32) {
    %c0_i32 = arith.constant 0 : i32
    %c0_i32_0 = arith.constant 0 : i32
    return %arg0, %c0_i32 : i32, i32
  }
  func.func @transform_7(%arg0: i32) -> (i32, i32) {
    %c0_i32 = arith.constant 0 : i32
    %c0_i32_0 = arith.constant 0 : i32
    return %arg0, %c0_i32 : i32, i32
  }
}

</mosaic_0001>

<llo_original>
// kernel: tpu_custom_call.1
$region0: #{tpu_custom_call.1}
  #allocation0 [shape = 'u32[]', space=smem, size = 0x4, offset = 0x4, fixed_abs, tag = 'smem constant byte address 0x4 - core index']
  #allocation1 [shape = 'u32[144,128]{1,0:T(1,128)}', space=vmem, size = 0x12000, scoped, tag = 'internal scratch']
  #allocation2 [shape = 'f32[8,32]{1,0:T(8,128)}', space=vmem, size = 0x1000, scoped, tag = 'scratch operand']
  %s0 = inlined_call_operand.hbm [shape: f32[8,32], index: 0, kind: input, shape index: {}]
  %s1 = inlined_call_operand.hbm [shape: f32[8,32], index: 1, kind: input, shape index: {}]
  %s2 = inlined_call_operand.hbm [shape: f32[32,32], index: 2, kind: input, shape index: {}]
  %s3 = inlined_call_operand.hbm [shape: f32[32,64], index: 3, kind: input, shape index: {}]
  %s4 = inlined_call_operand.hbm [shape: f32[32,128], index: 4, kind: input, shape index: {}]
  %s5 = inlined_call_operand.vmem [shape: f32[1,224], index: 5, kind: input, shape index: {}]
  %s6 = inlined_call_operand.hbm [shape: f32[8,128], index: 6, kind: output, shape index: {0}]
  %s7 = inlined_call_operand.hbm [shape: f32[8,128], index: 7, kind: output, shape index: {1}]
  %8 = xla_tuple %s6, %s7
  %s9 = sld [smem:[#allocation0]]
  $region62: #{tpu_custom_call.1} parent=0
    _
  %s11 = ssub.s32 1, %s9
  %s12 = scalar_select 0, %s11, %s9
  $region1: #{tpu_custom_call.1} parent=0
    #allocation3 [shape = 'u8[4096]{0}', space=vmem, size = 0x1000, scoped, tag = 'input window, operand 0, single buffered']
    #allocation4 [shape = 's32[1]{0}', space=sflag, size = 0x4, scoped, tag = 'scoped memory for tpu_custom_call.1']
    #allocation5 [shape = 's32[1]{0}', space=sflag, size = 0x4, scoped, tag = 'scoped memory for tpu_custom_call.1']
    #allocation6 [shape = 'u8[4096]{0}', space=vmem, size = 0x1000, scoped, tag = 'input window, operand 1, single buffered']
    #allocation7 [shape = 's32[1]{0}', space=sflag, size = 0x4, scoped, tag = 'scoped memory for tpu_custom_call.1']
    #allocation8 [shape = 'u8[16384]{0}', space=vmem, size = 0x4000, scoped, tag = 'input window, operand 2, single buffered']
    #allocation9 [shape = 'u8[16384]{0}', space=vmem, size = 0x4000, scoped, tag = 'input window, operand 3, single buffered']
    #allocation10 [shape = 's32[1]{0}', space=sflag, size = 0x4, scoped, tag = 'scoped memory for tpu_custom_call.1']
    #allocation11 [shape = 'u8[16384]{0}', space=vmem, size = 0x4000, scoped, tag = 'input window, operand 4, single buffered']
    #allocation12 [shape = 'u8[4096]{0}', space=vmem, size = 0x1000, scoped, tag = 'output window, operand 0, single buffered']
    #allocation13 [shape = 'u8[4096]{0}', space=vmem, size = 0x1000, scoped, tag = 'output window, operand 1, single buffered']
    #allocation14 [shape = 's32[1]{0}', space=sflag, size = 0x4, scoped, tag = 'scoped memory for tpu_custom_call.1']
    %13 = vsyncpa [#allocation4], 0
    %14 = vsyncpa [#allocation7], 0
    %15 = vsyncpa [#allocation10], 0
    %16 = vsyncpa [#allocation5], 0
    %17 = vsyncpa [#allocation14], 0
    // Predicated region
    $region2: #{tpu_custom_call.1} parent=1 // pred_check
      _
    $region3: #{tpu_custom_call.1} parent=1 // pred_check_branch
      %19 = sbr.rel (0) target = $region5
    $region4: #{tpu_custom_call.1} parent=1 // pred_region
      %s21 = ssub.s32 128, 128
      %22 = vsyncadd [#allocation4], %s21
      %s24 = sshll.u32 [#allocation3], 4
      %s25 = int_to_ptr.vmem [resolvable:$true] %s24
      %27 = dma.hbm_to_vmem [thread:$0]  %s0, 128, %s25, [#allocation4]
    $region5: #{tpu_custom_call.1} parent=1 // pred_fallthru
      _
    // Predicated region
    $region6: #{tpu_custom_call.1} parent=1 // pred_check
      _
    $region7: #{tpu_custom_call.1} parent=1 // pred_check_branch
      %29 = sbr.rel (0) target = $region9
    $region8: #{tpu_custom_call.1} parent=1 // pred_region
      %s31 = ssub.s32 128, 128
      %32 = vsyncadd [#allocation7], %s31
      %s34 = sshll.u32 [#allocation6], 4
      %s35 = int_to_ptr.vmem [resolvable:$true] %s34
      %37 = dma.hbm_to_vmem [thread:$0]  %s1, 128, %s35, [#allocation7]
    $region9: #{tpu_custom_call.1} parent=1 // pred_fallthru
      _
    // Predicated region
    $region10: #{tpu_custom_call.1} parent=1 // pred_check
      _
    $region11: #{tpu_custom_call.1} parent=1 // pred_check_branch
      %39 = sbr.rel (0) target = $region13
    $region12: #{tpu_custom_call.1} parent=1 // pred_region
      %s41 = ssub.s32 512, 512
      %42 = vsyncadd [#allocation7], %s41
      %s43 = sshll.u32 [#allocation8], 4
      %s44 = int_to_ptr.vmem [resolvable:$true] %s43
      %49 = dma.hbm_to_vmem [thread:$0]  %s2, 512, %s44, [#allocation7], 128, 128, 8
    $region13: #{tpu_custom_call.1} parent=1 // pred_fallthru
      _
    // Predicated region
    $region14: #{tpu_custom_call.1} parent=1 // pred_check
      _
    $region15: #{tpu_custom_call.1} parent=1 // pred_check_branch
      %51 = sbr.rel (0) target = $region17
    $region16: #{tpu_custom_call.1} parent=1 // pred_region
      %s53 = ssub.s32 512, 512
      %54 = vsyncadd [#allocation10], %s53
      %s55 = sshll.u32 [#allocation9], 4
      %s56 = int_to_ptr.vmem [resolvable:$true] %s55
      %61 = dma.hbm_to_vmem [thread:$0]  %s3, 512, %s56, [#allocation10], 128, 128, 8
    $region17: #{tpu_custom_call.1} parent=1 // pred_fallthru
      _
    // Predicated region
    $region18: #{tpu_custom_call.1} parent=1 // pred_check
      _
    $region19: #{tpu_custom_call.1} parent=1 // pred_check_branch
      %63 = sbr.rel (0) target = $region21
    $region20: #{tpu_custom_call.1} parent=1 // pred_region
      %s65 = ssub.s32 512, 512
      %66 = vsyncadd [#allocation10], %s65
      %s67 = sshll.u32 [#allocation11], 4
      %s68 = int_to_ptr.vmem [resolvable:$true] %s67
      %73 = dma.hbm_to_vmem [thread:$0]  %s4, 512, %s68, [#allocation10], 128, 128, 8
    $region21: #{tpu_custom_call.1} parent=1 // pred_fallthru
      _
    // Predicated region
    $region22: #{tpu_custom_call.1} parent=1 // pred_check
      _
    $region23: #{tpu_custom_call.1} parent=1 // pred_check_branch
      %75 = sbr.rel (0) target = $region25
    $region24: #{tpu_custom_call.1} parent=1 // pred_region
      _
    $region25: #{tpu_custom_call.1} parent=1 // pred_fallthru
      _
    // Predicated region
    $region26: #{tpu_custom_call.1} parent=1 // pred_check
      _
    $region27: #{tpu_custom_call.1} parent=1 // pred_check_branch
      %77 = sbr.rel (0) target = $region29
    $region28: #{tpu_custom_call.1} parent=1 // pred_region
      %78 = dma.done [#allocation4], 128
    $region29: #{tpu_custom_call.1} parent=1 // pred_fallthru
      _
    // Predicated region
    $region30: #{tpu_custom_call.1} parent=1 // pred_check
      _
    $region31: #{tpu_custom_call.1} parent=1 // pred_check_branch
      %80 = sbr.rel (0) target = $region33
    $region32: #{tpu_custom_call.1} parent=1 // pred_region
      %81 = dma.done [#allocation7], 128
    $region33: #{tpu_custom_call.1} parent=1 // pred_fallthru
      _
    // Predicated region
    $region34: #{tpu_custom_call.1} parent=1 // pred_check
      _
    $region35: #{tpu_custom_call.1} parent=1 // pred_check_branch
      %83 = sbr.rel (0) target = $region37
    $region36: #{tpu_custom_call.1} parent=1 // pred_region
      %84 = dma.done [#allocation7], 512
    $region37: #{tpu_custom_call.1} parent=1 // pred_fallthru
      _
    // Predicated region
    $region38: #{tpu_custom_call.1} parent=1 // pred_check
      _
    $region39: #{tpu_custom_call.1} parent=1 // pred_check_branch
      %86 = sbr.rel (0) target = $region41
    $region40: #{tpu_custom_call.1} parent=1 // pred_region
      %87 = dma.done [#allocation10], 512
    $region41: #{tpu_custom_call.1} parent=1 // pred_fallthru
      _
    // Predicated region
    $region42: #{tpu_custom_call.1} parent=1 // pred_check
      _
    $region43: #{tpu_custom_call.1} parent=1 // pred_check_branch
      %89 = sbr.rel (0) target = $region45
    $region44: #{tpu_custom_call.1} parent=1 // pred_region
      %90 = dma.done [#allocation10], 512
    $region45: #{tpu_custom_call.1} parent=1 // pred_fallthru
      _
    %v91 = vld [vmem:[#allocation3] sm:$0xff]
    %v92 = vld [vmem:[#allocation6] sm:$0xff]
    %v93 = vld [vmem:[%s5] sm:$0x3]
    %v94 = vld [vmem:[#allocation8] sm:$0xff]
    %v95 = vld [vmem:[#allocation8 + $0x8] sm:$0xff]
    %v96 = vld [vmem:[#allocation8 + $0x10] sm:$0xff]
    %v97 = vld [vmem:[#allocation8 + $0x18] sm:$0xff]
    %v99 = vlaneseq
    %v100 = vshrl.u32 %v99, 7
    %v101 = vsub.s32 0, %v100
    %v102 = vrot.slane %v93, %v101
    %vm104 = vcmask 261120
    %v106 = vsel %vm104, %v91, 0
    %108 = vmatprep.subr.mxu0 0.0
    %109 = vmatpush1.msra.mxu0 %v94
    %110 = vmatprep.subr.mxu0 0.0
    %111 = vmatpush1.msra.mxu0 %v95
    %112 = vmatprep.subr.mxu0 0.0
    %113 = vmatpush1.msra.mxu0 %v96
    %114 = vmatprep.subr.mxu0 0.0
    %115 = vmatpush1.msra.mxu0 %v97
    %116 = vmatprep.subr.mxu0 0.0
    %117 = vmatpush1.msra.mxu0 0.0
    %118 = vmatprep.subr.mxu0 0.0
    %119 = vmatpush1.msra.mxu0 0.0
    %120 = vmatprep.subr.mxu0 0.0
    %121 = vmatpush1.msra.mxu0 0.0
    %122 = vmatprep.subr.mxu0 0.0
    %123 = vmatpush1.msra.mxu0 0.0
    %124 = vmatprep.subr.mxu0 0.0
    %125 = vmatpush1.msra.mxu0 0.0
    %126 = vmatprep.subr.mxu0 0.0
    %127 = vmatpush1.msra.mxu0 0.0
    %128 = vmatprep.subr.mxu0 0.0
    %129 = vmatpush1.msra.mxu0 0.0
    %130 = vmatprep.subr.mxu0 0.0
    %131 = vmatpush1.msra.mxu0 0.0
    %132 = vmatprep.subr.mxu0 0.0
    %133 = vmatpush1.msra.mxu0 0.0
    %134 = vmatprep.subr.mxu0 0.0
    %135 = vmatpush1.msra.mxu0 0.0
    %136 = vmatprep.subr.mxu0 0.0
    %137 = vmatpush1.msra.mxu0 0.0
    %138 = vmatprep.subr.mxu0 0.0
    %139 = vmatpush1.msra.mxu0 0.0
    %140 = vmatprep.subr.mxu0 0.0
    %141 = vmatpush1.msra.mxu0 0.0
    %142 = vmatprep.subr.mxu0 0.0
    %143 = vmatpush1.msra.mxu0 0.0
    %144 = vmatprep.subr.mxu0 0.0
    %145 = vmatpush1.msra.mxu0 0.0
    %146 = vmatprep.subr.mxu0 0.0
    %147 = vmatpush1.msra.mxu0 0.0
    %148 = vmatprep.subr.mxu0 0.0
    %149 = vmatpush1.msra.mxu0 0.0
    %150 = vmatprep.subr.mxu0 0.0
    %151 = vmatpush1.msra.mxu0 0.0
    %152 = vmatprep.subr.mxu0 0.0
    %153 = vmatpush1.msra.mxu0 0.0
    %154 = vmatprep.subr.mxu0 0.0
    %155 = vmatpush1.msra.mxu0 0.0
    %156 = vmatprep.subr.mxu0 0.0
    %157 = vmatpush1.msra.mxu0 0.0
    %158 = vmatprep.subr.mxu0 0.0
    %159 = vmatpush1.msra.mxu0 0.0
    %160 = vmatprep.subr.mxu0 0.0
    %161 = vmatpush1.msra.mxu0 0.0
    %162 = vmatprep.subr.mxu0 0.0
    %163 = vmatpush1.msra.mxu0 0.0
    %164 = vmatprep.subr.mxu0 0.0
    %165 = vmatpush1.msra.mxu0 0.0
    %166 = vmatprep.subr.mxu0 0.0
    %167 = vmatpush1.msra.mxu0 0.0
    %168 = vmatprep.subr.mxu0 0.0
    %169 = vmatpush1.msra.mxu0 0.0
    %170 = vmatprep.subr.mxu0 0.0
    %171 = vmatpush1.msra.mxu0 0.0
    %172 = vmatprep.mubr.f32.mxu0 0.0
    %173 = vmatmul.mubr.f32.gmra.mrb[0].mxu0 %v106
    %v174 = vpop.f32.mrb[0].mxu0
    %v175 = vadd.f32 %v102, %v174
    %v176 = vpop.f32.mrb[0].mxu0
    %177 = vdwg.mxu0
    %v178 = vld [vmem:[#allocation9] sm:$0xff]
    %v179 = vld [vmem:[#allocation9 + $0x8] sm:$0xff]
    %v180 = vld [vmem:[#allocation9 + $0x10] sm:$0xff]
    %v181 = vld [vmem:[#allocation9 + $0x18] sm:$0xff]
    %182 = vrot.lane.b32.xlu0 %v102, 96
    %v183 = vpop.permute.xlu0 %182
    %v186 = vsel %vm104, %v92, 0
    %188 = vmatprep.subr.mxu0 0.0
    %189 = vmatpush1.msra.mxu0 %v178
    %190 = vmatprep.subr.mxu0 0.0
    %191 = vmatpush1.msra.mxu0 %v179
    %192 = vmatprep.subr.mxu0 0.0
    %193 = vmatpush1.msra.mxu0 %v180
    %194 = vmatprep.subr.mxu0 0.0
    %195 = vmatpush1.msra.mxu0 %v181
    %196 = vmatprep.subr.mxu0 0.0
    %197 = vmatpush1.msra.mxu0 0.0
    %198 = vmatprep.subr.mxu0 0.0
    %199 = vmatpush1.msra.mxu0 0.0
    %200 = vmatprep.subr.mxu0 0.0
    %201 = vmatpush1.msra.mxu0 0.0
    %202 = vmatprep.subr.mxu0 0.0
    %203 = vmatpush1.msra.mxu0 0.0
    %204 = vmatprep.subr.mxu0 0.0
    %205 = vmatpush1.msra.mxu0 0.0
    %206 = vmatprep.subr.mxu0 0.0
    %207 = vmatpush1.msra.mxu0 0.0
    %208 = vmatprep.subr.mxu0 0.0
    %209 = vmatpush1.msra.mxu0 0.0
    %210 = vmatprep.subr.mxu0 0.0
    %211 = vmatpush1.msra.mxu0 0.0
    %212 = vmatprep.subr.mxu0 0.0
    %213 = vmatpush1.msra.mxu0 0.0
    %214 = vmatprep.subr.mxu0 0.0
    %215 = vmatpush1.msra.mxu0 0.0
    %216 = vmatprep.subr.mxu0 0.0
    %217 = vmatpush1.msra.mxu0 0.0
    %218 = vmatprep.subr.mxu0 0.0
    %219 = vmatpush1.msra.mxu0 0.0
    %220 = vmatprep.subr.mxu0 0.0
    %221 = vmatpush1.msra.mxu0 0.0
    %222 = vmatprep.subr.mxu0 0.0
    %223 = vmatpush1.msra.mxu0 0.0
    %224 = vmatprep.subr.mxu0 0.0
    %225 = vmatpush1.msra.mxu0 0.0
    %226 = vmatprep.subr.mxu0 0.0
    %227 = vmatpush1.msra.mxu0 0.0
    %228 = vmatprep.subr.mxu0 0.0
    %229 = vmatpush1.msra.mxu0 0.0
    %230 = vmatprep.subr.mxu0 0.0
    %231 = vmatpush1.msra.mxu0 0.0
    %232 = vmatprep.subr.mxu0 0.0
    %233 = vmatpush1.msra.mxu0 0.0
    %234 = vmatprep.subr.mxu0 0.0
    %235 = vmatpush1.msra.mxu0 0.0
    %236 = vmatprep.subr.mxu0 0.0
    %237 = vmatpush1.msra.mxu0 0.0
    %238 = vmatprep.subr.mxu0 0.0
    %239 = vmatpush1.msra.mxu0 0.0
    %240 = vmatprep.subr.mxu0 0.0
    %241 = vmatpush1.msra.mxu0 0.0
    %242 = vmatprep.subr.mxu0 0.0
    %243 = vmatpush1.msra.mxu0 0.0
    %244 = vmatprep.subr.mxu0 0.0
    %245 = vmatpush1.msra.mxu0 0.0
    %246 = vmatprep.subr.mxu0 0.0
    %247 = vmatpush1.msra.mxu0 0.0
    %248 = vmatprep.subr.mxu0 0.0
    %249 = vmatpush1.msra.mxu0 0.0
    %250 = vmatprep.subr.mxu0 0.0
    %251 = vmatpush1.msra.mxu0 0.0
    %252 = vmatprep.mubr.f32.mxu0 0.0
    %253 = vmatmul.mubr.f32.gmra.mrb[0].mxu0 %v186
    %v254 = vpop.f32.mrb[0].mxu0
    %v255 = vadd.f32 %v183, %v254
    %v256 = vpop.f32.mrb[0].mxu0
    %257 = vdwg.mxu0
    %vm258 = vcmask 64512
    %v260 = vsel %vm258, %v175, 0
    %v263 = vsel %vm258, %v255, 0
    %265 = vmatprep.subr.mxu0 0.0
    %266 = vmatpush1.xpose.msra.mxu0 %v263
    %267 = vmatprep.subr.mxu0 0.0
    %268 = vmatpush1.xpose.msra.mxu0 0.0
    %269 = vmatprep.subr.mxu0 0.0
    %270 = vmatpush1.xpose.msra.mxu0 0.0
    %271 = vmatprep.subr.mxu0 0.0
    %272 = vmatpush1.xpose.msra.mxu0 0.0
    %273 = vmatprep.subr.mxu0 0.0
    %274 = vmatpush1.xpose.msra.mxu0 0.0
    %275 = vmatprep.subr.mxu0 0.0
    %276 = vmatpush1.xpose.msra.mxu0 0.0
    %277 = vmatprep.subr.mxu0 0.0
    %278 = vmatpush1.xpose.msra.mxu0 0.0
    %279 = vmatprep.subr.mxu0 0.0
    %280 = vmatpush1.xpose.msra.mxu0 0.0
    %281 = vmatprep.subr.mxu0 0.0
    %282 = vmatpush1.xpose.msra.mxu0 0.0
    %283 = vmatprep.subr.mxu0 0.0
    %284 = vmatpush1.xpose.msra.mxu0 0.0
    %285 = vmatprep.subr.mxu0 0.0
    %286 = vmatpush1.xpose.msra.mxu0 0.0
    %287 = vmatprep.subr.mxu0 0.0
    %288 = vmatpush1.xpose.msra.mxu0 0.0
    %289 = vmatprep.subr.mxu0 0.0
    %290 = vmatpush1.xpose.msra.mxu0 0.0
    %291 = vmatprep.subr.mxu0 0.0
    %292 = vmatpush1.xpose.msra.mxu0 0.0
    %293 = vmatprep.subr.mxu0 0.0
    %294 = vmatpush1.xpose.msra.mxu0 0.0
    %295 = vmatprep.subr.mxu0 0.0
    %296 = vmatpush1.xpose.msra.mxu0 0.0
    %297 = vmatprep.subr.mxu0 0.0
    %298 = vmatpush1.xpose.msra.mxu0 0.0
    %299 = vmatprep.subr.mxu0 0.0
    %300 = vmatpush1.xpose.msra.mxu0 0.0
    %301 = vmatprep.subr.mxu0 0.0
    %302 = vmatpush1.xpose.msra.mxu0 0.0
    %303 = vmatprep.subr.mxu0 0.0
    %304 = vmatpush1.xpose.msra.mxu0 0.0
    %305 = vmatprep.subr.mxu0 0.0
    %306 = vmatpush1.xpose.msra.mxu0 0.0
    %307 = vmatprep.subr.mxu0 0.0
    %308 = vmatpush1.xpose.msra.mxu0 0.0
    %309 = vmatprep.subr.mxu0 0.0
    %310 = vmatpush1.xpose.msra.mxu0 0.0
    %311 = vmatprep.subr.mxu0 0.0
    %312 = vmatpush1.xpose.msra.mxu0 0.0
    %313 = vmatprep.subr.mxu0 0.0
    %314 = vmatpush1.xpose.msra.mxu0 0.0
    %315 = vmatprep.subr.mxu0 0.0
    %316 = vmatpush1.xpose.msra.mxu0 0.0
    %317 = vmatprep.subr.mxu0 0.0
    %318 = vmatpush1.xpose.msra.mxu0 0.0
    %319 = vmatprep.subr.mxu0 0.0
    %320 = vmatpush1.xpose.msra.mxu0 0.0
    %321 = vmatprep.subr.mxu0 0.0
    %322 = vmatpush1.xpose.msra.mxu0 0.0
    %323 = vmatprep.subr.mxu0 0.0
    %324 = vmatpush1.xpose.msra.mxu0 0.0
    %325 = vmatprep.subr.mxu0 0.0
    %326 = vmatpush1.xpose.msra.mxu0 0.0
    %327 = vmatprep.subr.mxu0 0.0
    %328 = vmatpush1.xpose.msra.mxu0 0.0
    %329 = vmatprep.mubr.f32.mxu0 0.0
    %330 = vmatmul.mubr.f32.gmra.mrb[0].mxu0 %v260
    %v331 = vpop.f32.mrb[0].mxu0
    %v332 = vadd.f32 0.0, %v331
    %v333 = vpop.f32.mrb[0].mxu0
    %334 = vdwg.mxu0
    %v335 = vsel %vm258, %v332, -inf
    %336 = vmax.xlane.f32.xlu0 %v335
    %v337 = vpop.xlane.xlu0 %336
    %v338 = vsub.f32 %v332, %v337
    %v339 = vmul.f32 %v338, 1.442695
    %v340 = vpow.pop %v339
    %v341 = vsel %vm258, %v340, 0.0
    %342 = vadd.xlane.f32.xlu0 %v341
    %v343 = vpop.xlane.xlu0 %342
    %v344 = vrcp.pop %v343
    %v345 = vmul.f32 %v343, %v344
    %v346 = vsub.f32 2.0, %v345
    %v347 = vmul.f32 %v344, %v346
    %v348 = vmul.f32 %v340, %v347
    %v349 = vadd.f32 %v348, 0.0
    %350 = vrot.lane.b32.xlu0 %v255, 96
    %v351 = vpop.permute.xlu0 %350
    %v354 = vsel %vm258, %v348, 0
    %356 = vmatprep.subr.mxu0 0.0
    %357 = vmatpush1.msra.mxu0 %v351
    %358 = vmatprep.subr.mxu0 0.0
    %359 = vmatpush1.msra.mxu0 0.0
    %360 = vmatprep.subr.mxu0 0.0
    %361 = vmatpush1.msra.mxu0 0.0
    %362 = vmatprep.subr.mxu0 0.0
    %363 = vmatpush1.msra.mxu0 0.0
    %364 = vmatprep.subr.mxu0 0.0
    %365 = vmatpush1.msra.mxu0 0.0
    %366 = vmatprep.subr.mxu0 0.0
    %367 = vmatpush1.msra.mxu0 0.0
    %368 = vmatprep.subr.mxu0 0.0
    %369 = vmatpush1.msra.mxu0 0.0
    %370 = vmatprep.subr.mxu0 0.0
    %371 = vmatpush1.msra.mxu0 0.0
    %372 = vmatprep.subr.mxu0 0.0
    %373 = vmatpush1.msra.mxu0 0.0
    %374 = vmatprep.subr.mxu0 0.0
    %375 = vmatpush1.msra.mxu0 0.0
    %376 = vmatprep.subr.mxu0 0.0
    %377 = vmatpush1.msra.mxu0 0.0
    %378 = vmatprep.subr.mxu0 0.0
    %379 = vmatpush1.msra.mxu0 0.0
    %380 = vmatprep.subr.mxu0 0.0
    %381 = vmatpush1.msra.mxu0 0.0
    %382 = vmatprep.subr.mxu0 0.0
    %383 = vmatpush1.msra.mxu0 0.0
    %384 = vmatprep.subr.mxu0 0.0
    %385 = vmatpush1.msra.mxu0 0.0
    %386 = vmatprep.subr.mxu0 0.0
    %387 = vmatpush1.msra.mxu0 0.0
    %388 = vmatprep.subr.mxu0 0.0
    %389 = vmatpush1.msra.mxu0 0.0
    %390 = vmatprep.subr.mxu0 0.0
    %391 = vmatpush1.msra.mxu0 0.0
    %392 = vmatprep.subr.mxu0 0.0
    %393 = vmatpush1.msra.mxu0 0.0
    %394 = vmatprep.subr.mxu0 0.0
    %395 = vmatpush1.msra.mxu0 0.0
    %396 = vmatprep.subr.mxu0 0.0
    %397 = vmatpush1.msra.mxu0 0.0
    %398 = vmatprep.subr.mxu0 0.0
    %399 = vmatpush1.msra.mxu0 0.0
    %400 = vmatprep.subr.mxu0 0.0
    %401 = vmatpush1.msra.mxu0 0.0
    %402 = vmatprep.subr.mxu0 0.0
    %403 = vmatpush1.msra.mxu0 0.0
    %404 = vmatprep.subr.mxu0 0.0
    %405 = vmatpush1.msra.mxu0 0.0
    %406 = vmatprep.subr.mxu0 0.0
    %407 = vmatpush1.msra.mxu0 0.0
    %408 = vmatprep.subr.mxu0 0.0
    %409 = vmatpush1.msra.mxu0 0.0
    %410 = vmatprep.subr.mxu0 0.0
    %411 = vmatpush1.msra.mxu0 0.0
    %412 = vmatprep.subr.mxu0 0.0
    %413 = vmatpush1.msra.mxu0 0.0
    %414 = vmatprep.subr.mxu0 0.0
    %415 = vmatpush1.msra.mxu0 0.0
    %416 = vmatprep.subr.mxu0 0.0
    %417 = vmatpush1.msra.mxu0 0.0
    %418 = vmatprep.subr.mxu0 0.0
    %419 = vmatpush1.msra.mxu0 0.0
    %420 = vmatprep.mubr.f32.mxu0 0.0
    %421 = vmatmul.mubr.f32.gmra.mrb[0].mxu0 %v354
    %v422 = vpop.f32.mrb[0].mxu0
    %v423 = vadd.f32 0.0, %v422
    %v424 = vpop.f32.mrb[0].mxu0
    %425 = vdwg.mxu0
    %426 = vst.msk [vmem:[#allocation2] sm:$0xff] %vm258, %v423
    %427 = vrot.lane.b32.xlu0 %v175, 120
    %v428 = vpop.permute.xlu0 %427
    %429 = vrot.lane.b32.xlu0 %v255, 120
    %v430 = vpop.permute.xlu0 %429
    %v431 = vsel %vm258, %v428, 0
    %v433 = vsel %vm258, %v430, 0
    %435 = vmatprep.subr.mxu0 0.0
    %436 = vmatpush1.xpose.msra.mxu0 %v433
    %437 = vmatprep.subr.mxu0 0.0
    %438 = vmatpush1.xpose.msra.mxu0 0.0
    %439 = vmatprep.subr.mxu0 0.0
    %440 = vmatpush1.xpose.msra.mxu0 0.0
    %441 = vmatprep.subr.mxu0 0.0
    %442 = vmatpush1.xpose.msra.mxu0 0.0
    %443 = vmatprep.subr.mxu0 0.0
    %444 = vmatpush1.xpose.msra.mxu0 0.0
    %445 = vmatprep.subr.mxu0 0.0
    %446 = vmatpush1.xpose.msra.mxu0 0.0
    %447 = vmatprep.subr.mxu0 0.0
    %448 = vmatpush1.xpose.msra.mxu0 0.0
    %449 = vmatprep.subr.mxu0 0.0
    %450 = vmatpush1.xpose.msra.mxu0 0.0
    %451 = vmatprep.subr.mxu0 0.0
    %452 = vmatpush1.xpose.msra.mxu0 0.0
    %453 = vmatprep.subr.mxu0 0.0
    %454 = vmatpush1.xpose.msra.mxu0 0.0
    %455 = vmatprep.subr.mxu0 0.0
    %456 = vmatpush1.xpose.msra.mxu0 0.0
    %457 = vmatprep.subr.mxu0 0.0
    %458 = vmatpush1.xpose.msra.mxu0 0.0
    %459 = vmatprep.subr.mxu0 0.0
    %460 = vmatpush1.xpose.msra.mxu0 0.0
    %461 = vmatprep.subr.mxu0 0.0
    %462 = vmatpush1.xpose.msra.mxu0 0.0
    %463 = vmatprep.subr.mxu0 0.0
    %464 = vmatpush1.xpose.msra.mxu0 0.0
    %465 = vmatprep.subr.mxu0 0.0
    %466 = vmatpush1.xpose.msra.mxu0 0.0
    %467 = vmatprep.subr.mxu0 0.0
    %468 = vmatpush1.xpose.msra.mxu0 0.0
    %469 = vmatprep.subr.mxu0 0.0
    %470 = vmatpush1.xpose.msra.mxu0 0.0
    %471 = vmatprep.subr.mxu0 0.0
    %472 = vmatpush1.xpose.msra.mxu0 0.0
    %473 = vmatprep.subr.mxu0 0.0
    %474 = vmatpush1.xpose.msra.mxu0 0.0
    %475 = vmatprep.subr.mxu0 0.0
    %476 = vmatpush1.xpose.msra.mxu0 0.0
    %477 = vmatprep.subr.mxu0 0.0
    %478 = vmatpush1.xpose.msra.mxu0 0.0
    %479 = vmatprep.subr.mxu0 0.0
    %480 = vmatpush1.xpose.msra.mxu0 0.0
    %481 = vmatprep.subr.mxu0 0.0
    %482 = vmatpush1.xpose.msra.mxu0 0.0
    %483 = vmatprep.subr.mxu0 0.0
    %484 = vmatpush1.xpose.msra.mxu0 0.0
    %485 = vmatprep.subr.mxu0 0.0
    %486 = vmatpush1.xpose.msra.mxu0 0.0
    %487 = vmatprep.subr.mxu0 0.0
    %488 = vmatpush1.xpose.msra.mxu0 0.0
    %489 = vmatprep.subr.mxu0 0.0
    %490 = vmatpush1.xpose.msra.mxu0 0.0
    %491 = vmatprep.subr.mxu0 0.0
    %492 = vmatpush1.xpose.msra.mxu0 0.0
    %493 = vmatprep.subr.mxu0 0.0
    %494 = vmatpush1.xpose.msra.mxu0 0.0
    %495 = vmatprep.subr.mxu0 0.0
    %496 = vmatpush1.xpose.msra.mxu0 0.0
    %497 = vmatprep.subr.mxu0 0.0
    %498 = vmatpush1.xpose.msra.mxu0 0.0
    %499 = vmatprep.mubr.f32.mxu0 0.0
    %500 = vmatmul.mubr.f32.gmra.mrb[0].mxu0 %v431
    %v501 = vpop.f32.mrb[0].mxu0
    %v502 = vadd.f32 0.0, %v501
    %v503 = vpop.f32.mrb[0].mxu0
    %504 = vdwg.mxu0
    %v505 = vsel %vm258, %v502, -inf
    %506 = vmax.xlane.f32.xlu0 %v505
    %v507 = vpop.xlane.xlu0 %506
    %v508 = vsub.f32 %v502, %v507
    %v509 = vmul.f32 %v508, 1.442695
    %v510 = vpow.pop %v509
    %v511 = vsel %vm258, %v510, 0.0
    %512 = vadd.xlane.f32.xlu0 %v511
    %v513 = vpop.xlane.xlu0 %512
    %v514 = vrcp.pop %v513
    %v515 = vmul.f32 %v513, %v514
    %v516 = vsub.f32 2.0, %v515
    %v517 = vmul.f32 %v514, %v516
    %v518 = vmul.f32 %v510, %v517
    %v519 = vadd.f32 %v349, %v518
    %520 = vrot.lane.b32.xlu0 %v255, 88
    %v521 = vpop.permute.xlu0 %520
    %v524 = vsel %vm258, %v518, 0
    %526 = vmatprep.subr.mxu0 0.0
    %527 = vmatpush1.msra.mxu0 %v521
    %528 = vmatprep.subr.mxu0 0.0
    %529 = vmatpush1.msra.mxu0 0.0
    %530 = vmatprep.subr.mxu0 0.0
    %531 = vmatpush1.msra.mxu0 0.0
    %532 = vmatprep.subr.mxu0 0.0
    %533 = vmatpush1.msra.mxu0 0.0
    %534 = vmatprep.subr.mxu0 0.0
    %535 = vmatpush1.msra.mxu0 0.0
    %536 = vmatprep.subr.mxu0 0.0
    %537 = vmatpush1.msra.mxu0 0.0
    %538 = vmatprep.subr.mxu0 0.0
    %539 = vmatpush1.msra.mxu0 0.0
    %540 = vmatprep.subr.mxu0 0.0
    %541 = vmatpush1.msra.mxu0 0.0
    %542 = vmatprep.subr.mxu0 0.0
    %543 = vmatpush1.msra.mxu0 0.0
    %544 = vmatprep.subr.mxu0 0.0
    %545 = vmatpush1.msra.mxu0 0.0
    %546 = vmatprep.subr.mxu0 0.0
    %547 = vmatpush1.msra.mxu0 0.0
    %548 = vmatprep.subr.mxu0 0.0
    %549 = vmatpush1.msra.mxu0 0.0
    %550 = vmatprep.subr.mxu0 0.0
    %551 = vmatpush1.msra.mxu0 0.0
    %552 = vmatprep.subr.mxu0 0.0
    %553 = vmatpush1.msra.mxu0 0.0
    %554 = vmatprep.subr.mxu0 0.0
    %555 = vmatpush1.msra.mxu0 0.0
    %556 = vmatprep.subr.mxu0 0.0
    %557 = vmatpush1.msra.mxu0 0.0
    %558 = vmatprep.subr.mxu0 0.0
    %559 = vmatpush1.msra.mxu0 0.0
    %560 = vmatprep.subr.mxu0 0.0
    %561 = vmatpush1.msra.mxu0 0.0
    %562 = vmatprep.subr.mxu0 0.0
    %563 = vmatpush1.msra.mxu0 0.0
    %564 = vmatprep.subr.mxu0 0.0
    %565 = vmatpush1.msra.mxu0 0.0
    %566 = vmatprep.subr.mxu0 0.0
    %567 = vmatpush1.msra.mxu0 0.0
    %568 = vmatprep.subr.mxu0 0.0
    %569 = vmatpush1.msra.mxu0 0.0
    %570 = vmatprep.subr.mxu0 0.0
    %571 = vmatpush1.msra.mxu0 0.0
    %572 = vmatprep.subr.mxu0 0.0
    %573 = vmatpush1.msra.mxu0 0.0
    %574 = vmatprep.subr.mxu0 0.0
    %575 = vmatpush1.msra.mxu0 0.0
    %576 = vmatprep.subr.mxu0 0.0
    %577 = vmatpush1.msra.mxu0 0.0
    %578 = vmatprep.subr.mxu0 0.0
    %579 = vmatpush1.msra.mxu0 0.0
    %580 = vmatprep.subr.mxu0 0.0
    %581 = vmatpush1.msra.mxu0 0.0
    %582 = vmatprep.subr.mxu0 0.0
    %583 = vmatpush1.msra.mxu0 0.0
    %584 = vmatprep.subr.mxu0 0.0
    %585 = vmatpush1.msra.mxu0 0.0
    %586 = vmatprep.subr.mxu0 0.0
    %587 = vmatpush1.msra.mxu0 0.0
    %588 = vmatprep.subr.mxu0 0.0
    %589 = vmatpush1.msra.mxu0 0.0
    %590 = vmatprep.mubr.f32.mxu0 0.0
    %591 = vmatmul.mubr.f32.gmra.mrb[0].mxu0 %v524
    %v592 = vpop.f32.mrb[0].mxu0
    %v593 = vadd.f32 0.0, %v592
    %v594 = vpop.f32.mrb[0].mxu0
    %595 = vdwg.mxu0
    %597 = vrot.lane.b32.xlu0 %v593, 8
    %v598 = vpop.permute.xlu0 %597
    %vm600 = vcmask 130112
    %601 = vst.msk [vmem:[#allocation2] sm:$0xff] %vm600, %v598
    %602 = vrot.lane.b32.xlu0 %v175, 112
    %v603 = vpop.permute.xlu0 %602
    %604 = vrot.lane.b32.xlu0 %v255, 112
    %v605 = vpop.permute.xlu0 %604
    %v606 = vsel %vm258, %v603, 0
    %v608 = vsel %vm258, %v605, 0
    %610 = vmatprep.subr.mxu0 0.0
    %611 = vmatpush1.xpose.msra.mxu0 %v608
    %612 = vmatprep.subr.mxu0 0.0
    %613 = vmatpush1.xpose.msra.mxu0 0.0
    %614 = vmatprep.subr.mxu0 0.0
    %615 = vmatpush1.xpose.msra.mxu0 0.0
    %616 = vmatprep.subr.mxu0 0.0
    %617 = vmatpush1.xpose.msra.mxu0 0.0
    %618 = vmatprep.subr.mxu0 0.0
    %619 = vmatpush1.xpose.msra.mxu0 0.0
    %620 = vmatprep.subr.mxu0 0.0
    %621 = vmatpush1.xpose.msra.mxu0 0.0
    %622 = vmatprep.subr.mxu0 0.0
    %623 = vmatpush1.xpose.msra.mxu0 0.0
    %624 = vmatprep.subr.mxu0 0.0
    %625 = vmatpush1.xpose.msra.mxu0 0.0
    %626 = vmatprep.subr.mxu0 0.0
    %627 = vmatpush1.xpose.msra.mxu0 0.0
    %628 = vmatprep.subr.mxu0 0.0
    %629 = vmatpush1.xpose.msra.mxu0 0.0
    %630 = vmatprep.subr.mxu0 0.0
    %631 = vmatpush1.xpose.msra.mxu0 0.0
    %632 = vmatprep.subr.mxu0 0.0
    %633 = vmatpush1.xpose.msra.mxu0 0.0
    %634 = vmatprep.subr.mxu0 0.0
    %635 = vmatpush1.xpose.msra.mxu0 0.0
    %636 = vmatprep.subr.mxu0 0.0
    %637 = vmatpush1.xpose.msra.mxu0 0.0
    %638 = vmatprep.subr.mxu0 0.0
    %639 = vmatpush1.xpose.msra.mxu0 0.0
    %640 = vmatprep.subr.mxu0 0.0
    %641 = vmatpush1.xpose.msra.mxu0 0.0
    %642 = vmatprep.subr.mxu0 0.0
    %643 = vmatpush1.xpose.msra.mxu0 0.0
    %644 = vmatprep.subr.mxu0 0.0
    %645 = vmatpush1.xpose.msra.mxu0 0.0
    %646 = vmatprep.subr.mxu0 0.0
    %647 = vmatpush1.xpose.msra.mxu0 0.0
    %648 = vmatprep.subr.mxu0 0.0
    %649 = vmatpush1.xpose.msra.mxu0 0.0
    %650 = vmatprep.subr.mxu0 0.0
    %651 = vmatpush1.xpose.msra.mxu0 0.0
    %652 = vmatprep.subr.mxu0 0.0
    %653 = vmatpush1.xpose.msra.mxu0 0.0
    %654 = vmatprep.subr.mxu0 0.0
    %655 = vmatpush1.xpose.msra.mxu0 0.0
    %656 = vmatprep.subr.mxu0 0.0
    %657 = vmatpush1.xpose.msra.mxu0 0.0
    %658 = vmatprep.subr.mxu0 0.0
    %659 = vmatpush1.xpose.msra.mxu0 0.0
    %660 = vmatprep.subr.mxu0 0.0
    %661 = vmatpush1.xpose.msra.mxu0 0.0
    %662 = vmatprep.subr.mxu0 0.0
    %663 = vmatpush1.xpose.msra.mxu0 0.0
    %664 = vmatprep.subr.mxu0 0.0
    %665 = vmatpush1.xpose.msra.mxu0 0.0
    %666 = vmatprep.subr.mxu0 0.0
    %667 = vmatpush1.xpose.msra.mxu0 0.0
    %668 = vmatprep.subr.mxu0 0.0
    %669 = vmatpush1.xpose.msra.mxu0 0.0
    %670 = vmatprep.subr.mxu0 0.0
    %671 = vmatpush1.xpose.msra.mxu0 0.0
    %672 = vmatprep.subr.mxu0 0.0
    %673 = vmatpush1.xpose.msra.mxu0 0.0
    %674 = vmatprep.mubr.f32.mxu0 0.0
    %675 = vmatmul.mubr.f32.gmra.mrb[0].mxu0 %v606
    %v676 = vpop.f32.mrb[0].mxu0
    %v677 = vadd.f32 0.0, %v676
    %v678 = vpop.f32.mrb[0].mxu0
    %679 = vdwg.mxu0
    %v680 = vsel %vm258, %v677, -inf
    %681 = vmax.xlane.f32.xlu0 %v680
    %v682 = vpop.xlane.xlu0 %681
    %v683 = vsub.f32 %v677, %v682
    %v684 = vmul.f32 %v683, 1.442695
    %v685 = vpow.pop %v684
    %v686 = vsel %vm258, %v685, 0.0
    %687 = vadd.xlane.f32.xlu0 %v686
    %v688 = vpop.xlane.xlu0 %687
    %v689 = vrcp.pop %v688
    %v690 = vmul.f32 %v688, %v689
    %v691 = vsub.f32 2.0, %v690
    %v692 = vmul.f32 %v689, %v691
    %v693 = vmul.f32 %v685, %v692
    %v694 = vadd.f32 %v519, %v693
    %695 = vrot.lane.b32.xlu0 %v255, 80
    %v696 = vpop.permute.xlu0 %695
    %v699 = vsel %vm258, %v693, 0
    %701 = vmatprep.subr.mxu0 0.0
    %702 = vmatpush1.msra.mxu0 %v696
    %703 = vmatprep.subr.mxu0 0.0
    %704 = vmatpush1.msra.mxu0 0.0
    %705 = vmatprep.subr.mxu0 0.0
    %706 = vmatpush1.msra.mxu0 0.0
    %707 = vmatprep.subr.mxu0 0.0
    %708 = vmatpush1.msra.mxu0 0.0
    %709 = vmatprep.subr.mxu0 0.0
    %710 = vmatpush1.msra.mxu0 0.0
    %711 = vmatprep.subr.mxu0 0.0
    %712 = vmatpush1.msra.mxu0 0.0
    %713 = vmatprep.subr.mxu0 0.0
    %714 = vmatpush1.msra.mxu0 0.0
    %715 = vmatprep.subr.mxu0 0.0
    %716 = vmatpush1.msra.mxu0 0.0
    %717 = vmatprep.subr.mxu0 0.0
    %718 = vmatpush1.msra.mxu0 0.0
    %719 = vmatprep.subr.mxu0 0.0
    %720 = vmatpush1.msra.mxu0 0.0
    %721 = vmatprep.subr.mxu0 0.0
    %722 = vmatpush1.msra.mxu0 0.0
    %723 = vmatprep.subr.mxu0 0.0
    %724 = vmatpush1.msra.mxu0 0.0
    %725 = vmatprep.subr.mxu0 0.0
    %726 = vmatpush1.msra.mxu0 0.0
    %727 = vmatprep.subr.mxu0 0.0
    %728 = vmatpush1.msra.mxu0 0.0
    %729 = vmatprep.subr.mxu0 0.0
    %730 = vmatpush1.msra.mxu0 0.0
    %731 = vmatprep.subr.mxu0 0.0
    %732 = vmatpush1.msra.mxu0 0.0
    %733 = vmatprep.subr.mxu0 0.0
    %734 = vmatpush1.msra.mxu0 0.0
    %735 = vmatprep.subr.mxu0 0.0
    %736 = vmatpush1.msra.mxu0 0.0
    %737 = vmatprep.subr.mxu0 0.0
    %738 = vmatpush1.msra.mxu0 0.0
    %739 = vmatprep.subr.mxu0 0.0
    %740 = vmatpush1.msra.mxu0 0.0
    %741 = vmatprep.subr.mxu0 0.0
    %742 = vmatpush1.msra.mxu0 0.0
    %743 = vmatprep.subr.mxu0 0.0
    %744 = vmatpush1.msra.mxu0 0.0
    %745 = vmatprep.subr.mxu0 0.0
    %746 = vmatpush1.msra.mxu0 0.0
    %747 = vmatprep.subr.mxu0 0.0
    %748 = vmatpush1.msra.mxu0 0.0
    %749 = vmatprep.subr.mxu0 0.0
    %750 = vmatpush1.msra.mxu0 0.0
    %751 = vmatprep.subr.mxu0 0.0
    %752 = vmatpush1.msra.mxu0 0.0
    %753 = vmatprep.subr.mxu0 0.0
    %754 = vmatpush1.msra.mxu0 0.0
    %755 = vmatprep.subr.mxu0 0.0
    %756 = vmatpush1.msra.mxu0 0.0
    %757 = vmatprep.subr.mxu0 0.0
    %758 = vmatpush1.msra.mxu0 0.0
    %759 = vmatprep.subr.mxu0 0.0
    %760 = vmatpush1.msra.mxu0 0.0
    %761 = vmatprep.subr.mxu0 0.0
    %762 = vmatpush1.msra.mxu0 0.0
    %763 = vmatprep.subr.mxu0 0.0
    %764 = vmatpush1.msra.mxu0 0.0
    %765 = vmatprep.mubr.f32.mxu0 0.0
    %766 = vmatmul.mubr.f32.gmra.mrb[0].mxu0 %v699
    %v767 = vpop.f32.mrb[0].mxu0
    %v768 = vadd.f32 0.0, %v767
    %v769 = vpop.f32.mrb[0].mxu0
    %770 = vdwg.mxu0
    %772 = vrot.lane.b32.xlu0 %v768, 16
    %v773 = vpop.permute.xlu0 %772
    %vm775 = vcmask 195712
    %776 = vst.msk [vmem:[#allocation2] sm:$0xff] %vm775, %v773
    %777 = vrot.lane.b32.xlu0 %v175, 104
    %v778 = vpop.permute.xlu0 %777
    %779 = vrot.lane.b32.xlu0 %v255, 104
    %v780 = vpop.permute.xlu0 %779
    %v781 = vsel %vm258, %v778, 0
    %v783 = vsel %vm258, %v780, 0
    %785 = vmatprep.subr.mxu0 0.0
    %786 = vmatpush1.xpose.msra.mxu0 %v783
    %787 = vmatprep.subr.mxu0 0.0
    %788 = vmatpush1.xpose.msra.mxu0 0.0
    %789 = vmatprep.subr.mxu0 0.0
    %790 = vmatpush1.xpose.msra.mxu0 0.0
    %791 = vmatprep.subr.mxu0 0.0
    %792 = vmatpush1.xpose.msra.mxu0 0.0
    %793 = vmatprep.subr.mxu0 0.0
    %794 = vmatpush1.xpose.msra.mxu0 0.0
    %795 = vmatprep.subr.mxu0 0.0
    %796 = vmatpush1.xpose.msra.mxu0 0.0
    %797 = vmatprep.subr.mxu0 0.0
    %798 = vmatpush1.xpose.msra.mxu0 0.0
    %799 = vmatprep.subr.mxu0 0.0
    %800 = vmatpush1.xpose.msra.mxu0 0.0
    %801 = vmatprep.subr.mxu0 0.0
    %802 = vmatpush1.xpose.msra.mxu0 0.0
    %803 = vmatprep.subr.mxu0 0.0
    %804 = vmatpush1.xpose.msra.mxu0 0.0
    %805 = vmatprep.subr.mxu0 0.0
    %806 = vmatpush1.xpose.msra.mxu0 0.0
    %807 = vmatprep.subr.mxu0 0.0
    %808 = vmatpush1.xpose.msra.mxu0 0.0
    %809 = vmatprep.subr.mxu0 0.0
    %810 = vmatpush1.xpose.msra.mxu0 0.0
    %811 = vmatprep.subr.mxu0 0.0
    %812 = vmatpush1.xpose.msra.mxu0 0.0
    %813 = vmatprep.subr.mxu0 0.0
    %814 = vmatpush1.xpose.msra.mxu0 0.0
    %815 = vmatprep.subr.mxu0 0.0
    %816 = vmatpush1.xpose.msra.mxu0 0.0
    %817 = vmatprep.subr.mxu0 0.0
    %818 = vmatpush1.xpose.msra.mxu0 0.0
    %819 = vmatprep.subr.mxu0 0.0
    %820 = vmatpush1.xpose.msra.mxu0 0.0
    %821 = vmatprep.subr.mxu0 0.0
    %822 = vmatpush1.xpose.msra.mxu0 0.0
    %823 = vmatprep.subr.mxu0 0.0
    %824 = vmatpush1.xpose.msra.mxu0 0.0
    %825 = vmatprep.subr.mxu0 0.0
    %826 = vmatpush1.xpose.msra.mxu0 0.0
    %827 = vmatprep.subr.mxu0 0.0
    %828 = vmatpush1.xpose.msra.mxu0 0.0
    %829 = vmatprep.subr.mxu0 0.0
    %830 = vmatpush1.xpose.msra.mxu0 0.0
    %831 = vmatprep.subr.mxu0 0.0
    %832 = vmatpush1.xpose.msra.mxu0 0.0
    %833 = vmatprep.subr.mxu0 0.0
    %834 = vmatpush1.xpose.msra.mxu0 0.0
    %835 = vmatprep.subr.mxu0 0.0
    %836 = vmatpush1.xpose.msra.mxu0 0.0
    %837 = vmatprep.subr.mxu0 0.0
    %838 = vmatpush1.xpose.msra.mxu0 0.0
    %839 = vmatprep.subr.mxu0 0.0
    %840 = vmatpush1.xpose.msra.mxu0 0.0
    %841 = vmatprep.subr.mxu0 0.0
    %842 = vmatpush1.xpose.msra.mxu0 0.0
    %843 = vmatprep.subr.mxu0 0.0
    %844 = vmatpush1.xpose.msra.mxu0 0.0
    %845 = vmatprep.subr.mxu0 0.0
    %846 = vmatpush1.xpose.msra.mxu0 0.0
    %847 = vmatprep.subr.mxu0 0.0
    %848 = vmatpush1.xpose.msra.mxu0 0.0
    %849 = vmatprep.mubr.f32.mxu0 0.0
    %850 = vmatmul.mubr.f32.gmra.mrb[0].mxu0 %v781
    %v851 = vpop.f32.mrb[0].mxu0
    %v852 = vadd.f32 0.0, %v851
    %v853 = vpop.f32.mrb[0].mxu0
    %854 = vdwg.mxu0
    %v855 = vsel %vm258, %v852, -inf
    %856 = vmax.xlane.f32.xlu0 %v855
    %v857 = vpop.xlane.xlu0 %856
    %v858 = vsub.f32 %v852, %v857
    %v859 = vmul.f32 %v858, 1.442695
    %v860 = vpow.pop %v859
    %v861 = vsel %vm258, %v860, 0.0
    %862 = vadd.xlane.f32.xlu0 %v861
    %v863 = vpop.xlane.xlu0 %862
    %v864 = vrcp.pop %v863
    %v865 = vmul.f32 %v863, %v864
    %v866 = vsub.f32 2.0, %v865
    %v867 = vmul.f32 %v864, %v866
    %v868 = vmul.f32 %v860, %v867
    %v869 = vadd.f32 %v694, %v868
    %870 = vrot.lane.b32.xlu0 %v255, 72
    %v871 = vpop.permute.xlu0 %870
    %v874 = vsel %vm258, %v868, 0
    %876 = vmatprep.subr.mxu0 0.0
    %877 = vmatpush1.msra.mxu0 %v871
    %878 = vmatprep.subr.mxu0 0.0
    %879 = vmatpush1.msra.mxu0 0.0
    %880 = vmatprep.subr.mxu0 0.0
    %881 = vmatpush1.msra.mxu0 0.0
    %882 = vmatprep.subr.mxu0 0.0
    %883 = vmatpush1.msra.mxu0 0.0
    %884 = vmatprep.subr.mxu0 0.0
    %885 = vmatpush1.msra.mxu0 0.0
    %886 = vmatprep.subr.mxu0 0.0
    %887 = vmatpush1.msra.mxu0 0.0
    %888 = vmatprep.subr.mxu0 0.0
    %889 = vmatpush1.msra.mxu0 0.0
    %890 = vmatprep.subr.mxu0 0.0
    %891 = vmatpush1.msra.mxu0 0.0
    %892 = vmatprep.subr.mxu0 0.0
    %893 = vmatpush1.msra.mxu0 0.0
    %894 = vmatprep.subr.mxu0 0.0
    %895 = vmatpush1.msra.mxu0 0.0
    %896 = vmatprep.subr.mxu0 0.0
    %897 = vmatpush1.msra.mxu0 0.0
    %898 = vmatprep.subr.mxu0 0.0
    %899 = vmatpush1.msra.mxu0 0.0
    %900 = vmatprep.subr.mxu0 0.0
    %901 = vmatpush1.msra.mxu0 0.0
    %902 = vmatprep.subr.mxu0 0.0
    %903 = vmatpush1.msra.mxu0 0.0
    %904 = vmatprep.subr.mxu0 0.0
    %905 = vmatpush1.msra.mxu0 0.0
    %906 = vmatprep.subr.mxu0 0.0
    %907 = vmatpush1.msra.mxu0 0.0
    %908 = vmatprep.subr.mxu0 0.0
    %909 = vmatpush1.msra.mxu0 0.0
    %910 = vmatprep.subr.mxu0 0.0
    %911 = vmatpush1.msra.mxu0 0.0
    %912 = vmatprep.subr.mxu0 0.0
    %913 = vmatpush1.msra.mxu0 0.0
    %914 = vmatprep.subr.mxu0 0.0
    %915 = vmatpush1.msra.mxu0 0.0
    %916 = vmatprep.subr.mxu0 0.0
    %917 = vmatpush1.msra.mxu0 0.0
    %918 = vmatprep.subr.mxu0 0.0
    %919 = vmatpush1.msra.mxu0 0.0
    %920 = vmatprep.subr.mxu0 0.0
    %921 = vmatpush1.msra.mxu0 0.0
    %922 = vmatprep.subr.mxu0 0.0
    %923 = vmatpush1.msra.mxu0 0.0
    %924 = vmatprep.subr.mxu0 0.0
    %925 = vmatpush1.msra.mxu0 0.0
    %926 = vmatprep.subr.mxu0 0.0
    %927 = vmatpush1.msra.mxu0 0.0
    %928 = vmatprep.subr.mxu0 0.0
    %929 = vmatpush1.msra.mxu0 0.0
    %930 = vmatprep.subr.mxu0 0.0
    %931 = vmatpush1.msra.mxu0 0.0
    %932 = vmatprep.subr.mxu0 0.0
    %933 = vmatpush1.msra.mxu0 0.0
    %934 = vmatprep.subr.mxu0 0.0
    %935 = vmatpush1.msra.mxu0 0.0
    %936 = vmatprep.subr.mxu0 0.0
    %937 = vmatpush1.msra.mxu0 0.0
    %938 = vmatprep.subr.mxu0 0.0
    %939 = vmatpush1.msra.mxu0 0.0
    %940 = vmatprep.mubr.f32.mxu0 0.0
    %941 = vmatmul.mubr.f32.gmra.mrb[0].mxu0 %v874
    %v942 = vpop.f32.mrb[0].mxu0
    %v943 = vadd.f32 0.0, %v942
    %v944 = vpop.f32.mrb[0].mxu0
    %945 = vdwg.mxu0
    %947 = vrot.lane.b32.xlu0 %v943, 24
    %v948 = vpop.permute.xlu0 %947
    %vm950 = vcmask 261312
    %951 = vst.msk [vmem:[#allocation2] sm:$0xff] %vm950, %v948
    %v952 = vld [vmem:[#allocation2] sm:$0xff]
    %v953 = vld [vmem:[#allocation11] sm:$0xff]
    %v954 = vld [vmem:[#allocation11 + $0x8] sm:$0xff]
    %v955 = vld [vmem:[#allocation11 + $0x10] sm:$0xff]
    %v956 = vld [vmem:[#allocation11 + $0x18] sm:$0xff]
    %v957 = vlaneseq
    %v958 = vshrl.u32 %v957, 7
    %v959 = vsub.s32 1, %v958
    %v960 = vrot.slane %v93, %v959
    %961 = vrot.lane.b32.xlu0 %v102, 32
    %v962 = vpop.permute.xlu0 %961
    %963 = vrot.lane.b32.xlu0 %v960, 32
    %v964 = vpop.permute.xlu0 %963
    %v965 = vsel %vm104, %v962, %v964
    %v968 = vsel %vm104, %v952, 0
    %970 = vmatprep.subr.mxu0 0.0
    %971 = vmatpush1.msra.mxu0 %v953
    %972 = vmatprep.subr.mxu0 0.0
    %973 = vmatpush1.msra.mxu0 %v954
    %974 = vmatprep.subr.mxu0 0.0
    %975 = vmatpush1.msra.mxu0 %v955
    %976 = vmatprep.subr.mxu0 0.0
    %977 = vmatpush1.msra.mxu0 %v956
    %978 = vmatprep.subr.mxu0 0.0
    %979 = vmatpush1.msra.mxu0 0.0
    %980 = vmatprep.subr.mxu0 0.0
    %981 = vmatpush1.msra.mxu0 0.0
    %982 = vmatprep.subr.mxu0 0.0
    %983 = vmatpush1.msra.mxu0 0.0
    %984 = vmatprep.subr.mxu0 0.0
    %985 = vmatpush1.msra.mxu0 0.0
    %986 = vmatprep.subr.mxu0 0.0
    %987 = vmatpush1.msra.mxu0 0.0
    %988 = vmatprep.subr.mxu0 0.0
    %989 = vmatpush1.msra.mxu0 0.0
    %990 = vmatprep.subr.mxu0 0.0
    %991 = vmatpush1.msra.mxu0 0.0
    %992 = vmatprep.subr.mxu0 0.0
    %993 = vmatpush1.msra.mxu0 0.0
    %994 = vmatprep.subr.mxu0 0.0
    %995 = vmatpush1.msra.mxu0 0.0
    %996 = vmatprep.subr.mxu0 0.0
    %997 = vmatpush1.msra.mxu0 0.0
    %998 = vmatprep.subr.mxu0 0.0
    %999 = vmatpush1.msra.mxu0 0.0
    %1000 = vmatprep.subr.mxu0 0.0
    %1001 = vmatpush1.msra.mxu0 0.0
    %1002 = vmatprep.subr.mxu0 0.0
    %1003 = vmatpush1.msra.mxu0 0.0
    %1004 = vmatprep.subr.mxu0 0.0
    %1005 = vmatpush1.msra.mxu0 0.0
    %1006 = vmatprep.subr.mxu0 0.0
    %1007 = vmatpush1.msra.mxu0 0.0
    %1008 = vmatprep.subr.mxu0 0.0
    %1009 = vmatpush1.msra.mxu0 0.0
    %1010 = vmatprep.subr.mxu0 0.0
    %1011 = vmatpush1.msra.mxu0 0.0
    %1012 = vmatprep.subr.mxu0 0.0
    %1013 = vmatpush1.msra.mxu0 0.0
    %1014 = vmatprep.subr.mxu0 0.0
    %1015 = vmatpush1.msra.mxu0 0.0
    %1016 = vmatprep.subr.mxu0 0.0
    %1017 = vmatpush1.msra.mxu0 0.0
    %1018 = vmatprep.subr.mxu0 0.0
    %1019 = vmatpush1.msra.mxu0 0.0
    %1020 = vmatprep.subr.mxu0 0.0
    %1021 = vmatpush1.msra.mxu0 0.0
    %1022 = vmatprep.subr.mxu0 0.0
    %1023 = vmatpush1.msra.mxu0 0.0
    %1024 = vmatprep.subr.mxu0 0.0
    %1025 = vmatpush1.msra.mxu0 0.0
    %1026 = vmatprep.subr.mxu0 0.0
    %1027 = vmatpush1.msra.mxu0 0.0
    %1028 = vmatprep.subr.mxu0 0.0
    %1029 = vmatpush1.msra.mxu0 0.0
    %1030 = vmatprep.subr.mxu0 0.0
    %1031 = vmatpush1.msra.mxu0 0.0
    %1032 = vmatprep.subr.mxu0 0.0
    %1033 = vmatpush1.msra.mxu0 0.0
    %1034 = vmatprep.mubr.f32.mxu0 0.0
    %1035 = vmatmul.mubr.f32.gmra.mrb[0].mxu0 %v968
    %v1036 = vpop.f32.mrb[0].mxu0
    %v1037 = vadd.f32 %v965, %v1036
    %v1038 = vpop.f32.mrb[0].mxu0
    %1039 = vdwg.mxu0
    %1040 = vst [vmem:[#allocation12] sm:$0xff] %v1037
    %v1041 = vmul.f32 %v869, 0.25
    %1042 = vst [vmem:[#allocation13] sm:$0xff] 0.0
    %1043 = vst.msk [vmem:[#allocation13] sm:$0xff] %vm258, %v1041
    // Predicated region
    $region46: #{tpu_custom_call.1} parent=1 // pred_check
      _
    $region47: #{tpu_custom_call.1} parent=1 // pred_check_branch
      %1045 = sbr.rel (0) target = $region49
    $region48: #{tpu_custom_call.1} parent=1 // pred_region
      %s1047 = ssub.s32 128, 128
      %1048 = vsyncadd [#allocation5], %s1047
      %s1050 = sshll.u32 [#allocation12], 4
      %s1051 = int_to_ptr.vmem [resolvable:$true] %s1050
      %1053 = dma.vmem_to_hbm [thread:$0]  %s1051, 128, %s6, [#allocation5]
    $region49: #{tpu_custom_call.1} parent=1 // pred_fallthru
      _
    // Predicated region
    $region50: #{tpu_custom_call.1} parent=1 // pred_check
      _
    $region51: #{tpu_custom_call.1} parent=1 // pred_check_branch
      %1055 = sbr.rel (0) target = $region53
    $region52: #{tpu_custom_call.1} parent=1 // pred_region
      %s1057 = ssub.s32 128, 128
      %1058 = vsyncadd [#allocation14], %s1057
      %s1060 = sshll.u32 [#allocation13], 4
      %s1061 = int_to_ptr.vmem [resolvable:$true] %s1060
      %1063 = dma.vmem_to_hbm [thread:$0]  %s1061, 128, %s7, [#allocation14]
    $region53: #{tpu_custom_call.1} parent=1 // pred_fallthru
      _
    // Predicated region
    $region54: #{tpu_custom_call.1} parent=1 // pred_check
      _
    $region55: #{tpu_custom_call.1} parent=1 // pred_check_branch
      %1065 = sbr.rel (0) target = $region57
    $region56: #{tpu_custom_call.1} parent=1 // pred_region
      %1066 = dma.done [#allocation5], 128
    $region57: #{tpu_custom_call.1} parent=1 // pred_fallthru
      _
    // Predicated region
    $region58: #{tpu_custom_call.1} parent=1 // pred_check
      _
    $region59: #{tpu_custom_call.1} parent=1 // pred_check_branch
      %1068 = sbr.rel (0) target = $region61
    $region60: #{tpu_custom_call.1} parent=1 // pred_region
      %1069 = dma.done [#allocation14], 128
    $region61: #{tpu_custom_call.1} parent=1 // pred_fallthru
      _
    %1070 = vsyncpa [#allocation4], 1
    %1071 = vsyncpa [#allocation7], 1
    %1072 = vsyncpa [#allocation10], 1
    %1073 = vsyncpa [#allocation5], 1
    %1074 = vsyncpa [#allocation14], 1

</llo_original>
